<compile_context>
chip_gen: v6e
topology: v6e:2x2x1
jax: 0.10.0
libtpu: 0.0.40
codegen_flags: <defaults>
</compile_context>

<pallas_src>
import functools

import jax
import jax.numpy as jnp
from jax.experimental import pallas as pl
from jax.experimental.pallas import tpu as pltpu

BN_EPS = 1e-5


# --------------------------- sizing / chip heuristics ---------------------------

def _vmem_budget_bytes():
    """Usable VMEM budget: 128 MiB physical on v4/v5e/v5p/v6e, 64 MiB on v7x."""
    try:
        kind = jax.devices()[0].device_kind.lower()
    except Exception:
        kind = ""
    if "v7" in kind:
        return 48 * 1024 * 1024
    return 96 * 1024 * 1024


def _pass2_step_bytes(cin, c, hid, d, num_heads, tl):
    """Rough per-grid-step VMEM working set of the pixel pass (weights double-buffered)."""
    weights = 2 * (c * cin * 4 + hid * c * 2 + d * hid * 2 + 2 * hid * 4)
    per_lane = (4 + 2 + 2) * c + (4 + 4 + 2) * hid + (4 + 4 + 4 + 2) * d
    io = 2 * cin * tl * 4
    ch = c // num_heads
    scratch = (2 * d + d * ch) * 4
    out = 2 * d * ch * 4
    return weights + per_lane * tl + io + scratch + out


def _pick_l_tile(L, cin, c, hid, d, num_heads, budget):
    """Largest spatial tile (multiple of 128) whose pass-2 working set fits the VMEM budget.

    v5e/v6e (96 MiB budget) keep 512-1024-wide tiles even at C=hid=D~2048; v7x (48 MiB budget)
    gets capped (~256 at those sizes), per the perf review.
    """
    for t in (1024, 512, 256, 128):
        if L % t == 0 and _pass2_step_bytes(cin, c, hid, d, num_heads, t) <= budget // 2:
            return t
    if L % 128 == 0:
        return 128
    return L  # small-L fallback (single tile); see channel-on-lanes TODO above


def _grid_compiler_params(step_bytes, budget):
    # Only override the default scoped-VMEM limit when the working set actually needs it.
    limit = None
    if step_bytes > 12 * 1024 * 1024:
        limit = int(min(budget, max(32 * 1024 * 1024, 2 * step_bytes)))
    return pltpu.CompilerParams(
        dimension_semantics=("parallel", "arbitrary"),
        vmem_limit_bytes=limit)


def _conv1x1_relu(w, x):
    """Backbone 1x1 conv (+ReLU) over Cin channels as Cin VPU FMAs.

    K=Cin(=3) on the MXU would use ~3/256 of the systolic array, so keep it off the MXU.
    w: (C, Cin) f32, x: (Cin, TL) f32 -> (C, TL) f32.
    """
    acc = w[:, 0:1] * x[0:1, :]
    for i in range(1, w.shape[1]):
        acc = acc + w[:, i:i + 1] * x[i:i + 1, :]
    return jnp.maximum(acc, 0.0)


# ----------------------------- pass 1: statistics -----------------------------

def _stats_kernel(im_ref, wbb_ref, w1_ref, featsum_ref, h1sq_ref):
    @pl.when(pl.program_id(1) == 0)
    def _():
        featsum_ref[...] = jnp.zeros_like(featsum_ref)
        h1sq_ref[...] = jnp.zeros_like(h1sq_ref)

    feat = _conv1x1_relu(wbb_ref[...], im_ref[0])                        # (C, TL) f32
    h1 = jnp.dot(w1_ref[...], feat.astype(jnp.bfloat16),
                 preferred_element_type=jnp.float32)                     # (hid, TL) f32 acc

    # sum_L(feat) feeds the global-pool branch and (via W1 @ featsum, wrapper-side) the BN
    # mean; sum_L(h1^2) feeds the BN variance.  The h1sum accumulator was dropped (linear).
    featsum_ref[0] += jnp.sum(feat, axis=1, keepdims=True)               # (C, 1)
    # TODO(synk): at very large B*L, accumulate (h1 - shift)^2 around a per-channel shift
    # (Welford-style merge) to harden the E[x^2]-E[x]^2 variance against cancellation.
    h1sq_ref[0] += jnp.sum(h1 * h1, axis=1, keepdims=True)               # (hid, 1)


def _stats_pass(im3, w_bb, w1_bf, *, l_tile, compiler_params):
    B, Cin, L = im3.shape
    C = w_bb.shape[0]
    hid = w1_bf.shape[0]
    nL = L // l_tile
    return pl.pallas_call(
        _stats_kernel,
        out_shape=(jax.ShapeDtypeStruct((B, C, 1), jnp.float32),
                   jax.ShapeDtypeStruct((B, hid, 1), jnp.float32)),
        grid=(B, nL),
        in_specs=[pl.BlockSpec((1, Cin, l_tile), lambda b, l: (b, 0, l)),
                  pl.BlockSpec((C, Cin), lambda b, l: (0, 0)),
                  pl.BlockSpec((hid, C), lambda b, l: (0, 0))],
        out_specs=(pl.BlockSpec((1, C, 1), lambda b, l: (b, 0, 0)),
                   pl.BlockSpec((1, hid, 1), lambda b, l: (b, 0, 0))),
        compiler_params=compiler_params,
    )(im3, w_bb, w1_bf)


# -------------------- pass 2: proj_pixel + online softmax + heads contraction --------------------

def _pixel_kernel(im_ref, wbb_ref, w1_ref, bna_ref, bnb_ref, w2_ref, objraw_ref,
                  m_sc, l_sc, acc_sc, *, num_heads, scale, exp_bf16):
    l = pl.program_id(1)

    @pl.when(l == 0)
    def _():
        m_sc[...] = jnp.full_like(m_sc, -jnp.inf)
        l_sc[...] = jnp.zeros_like(l_sc)
        acc_sc[...] = jnp.zeros_like(acc_sc)

    feat = _conv1x1_relu(wbb_ref[...], im_ref[0])                        # (C, TL) f32
    feat_bf = feat.astype(jnp.bfloat16)
    # One hoisted transpose per tile so each per-head contraction below is a plain MXU dot
    # against a static column slice (no per-head implicit XLU transposes).
    featT_bf = feat.T.astype(jnp.bfloat16)                               # (TL, C)

    # proj_pixel: conv1x1 -> BN (pre-folded train-mode affine) -> ReLU -> conv1x1
    h1 = jnp.dot(w1_ref[...], feat_bf, preferred_element_type=jnp.float32)      # (hid, TL)
    hn = jnp.maximum(h1 * bna_ref[...] + bnb_ref[...], 0.0)                     # single FMA
    z = jnp.dot(w2_ref[...], hn.astype(jnp.bfloat16),
                preferred_element_type=jnp.float32)                             # (D, TL)

    # Fused L2-normalize over channels + 1/scale (rsqrt on EUP; matches F.normalize eps=1e-12).
    ss = jnp.sum(z * z, axis=0, keepdims=True)                                  # (1, TL)
    logits = z * (jax.lax.rsqrt(jnp.maximum(ss, 1e-24)) * (1.0 / scale))        # (D, TL)

    # Online softmax over the tiled spatial axis (flash-attention style).
    m_prev = m_sc[...]
    m_new = jnp.maximum(m_prev, jnp.max(logits, axis=1, keepdims=True))         # (D, 1)
    alpha = jnp.exp(m_prev - m_new)
    delta = logits - m_new
    # exp_bf16: numerator exp in bf16 on chips with a bf16 EUP (v6e/v7x); m/l/alpha stay f32.
    p = jnp.exp(delta.astype(jnp.bfloat16) if exp_bf16 else delta)              # (D, TL)
    l_sc[...] = alpha * l_sc[...] + jnp.sum(p.astype(jnp.float32), axis=1, keepdims=True)
    m_sc[...] = m_new

    # Per-head attn @ feat^T accumulation.  acc_sc is (D, Ch): rows h*Qh..(h+1)*Qh-1 hold head
    # h.  One vectorized alpha rescale replaces the previous 8 per-head read-modify-writes.
    p_bf = p.astype(jnp.bfloat16)
    acc_sc[...] = acc_sc[...] * alpha                                            # (D, Ch)
    D = logits.shape[0]
    C = feat.shape[0]
    Qh, Ch = D // num_heads, C // num_heads
    for h in range(num_heads):
        acc_sc[h * Qh:(h + 1) * Qh, :] += jnp.dot(
            p_bf[h * Qh:(h + 1) * Qh, :], featT_bf[:, h * Ch:(h + 1) * Ch],
            preferred_element_type=jnp.float32)                                 # (Qh, Ch)

    @pl.when(l == pl.num_programs(1) - 1)
    def _():
        # Exact reciprocal: this is epilogue-only (once per batch element), so approx buys
        # nothing and the exact form removes one of the flagged error sources.
        inv_l = pl.reciprocal(l_sc[...], approx=False)                           # (D, 1)
        objraw_ref[0] = acc_sc[...] * inv_l                                      # one store


def _pixel_pass(im3, w_bb, w1_bf, bn_a, bn_b, w2_bf, *,
                num_heads, scale, l_tile, exp_bf16, compiler_params):
    B, Cin, L = im3.shape
    C = w_bb.shape[0]
    hid = w1_bf.shape[0]
    D = w2_bf.shape[0]
    Ch = C // num_heads
    nL = L // l_tile
    kern = functools.partial(_pixel_kernel, num_heads=num_heads, scale=scale, exp_bf16=exp_bf16)
    return pl.pallas_call(
        kern,
        out_shape=jax.ShapeDtypeStruct((B, D, Ch), jnp.float32),
        grid=(B, nL),
        in_specs=[pl.BlockSpec((1, Cin, l_tile), lambda b, l: (b, 0, l)),
                  pl.BlockSpec((C, Cin), lambda b, l: (0, 0)),
                  pl.BlockSpec((hid, C), lambda b, l: (0, 0)),
                  pl.BlockSpec((hid, 1), lambda b, l: (0, 0)),
                  pl.BlockSpec((hid, 1), lambda b, l: (0, 0)),
                  pl.BlockSpec((D, hid), lambda b, l: (0, 0))],
        out_specs=pl.BlockSpec((1, D, Ch), lambda b, l: (b, 0, 0)),
        scratch_shapes=[pltpu.VMEM((D, 1), jnp.float32),
                        pltpu.VMEM((D, 1), jnp.float32),
                        pltpu.VMEM((D, Ch), jnp.float32)],
        compiler_params=compiler_params,
    )(im3, w_bb, w1_bf, bn_a, bn_b, w2_bf)


# ------------------------- pass 3: tiny MLP heads (proj / proj_obj) -------------------------

def _heads_kernel(pool_ref, objraw_ref, pw1_ref, pg1_ref, pb1_ref, pw2_ref,
                  ow1_ref, og1_ref, ob1_ref, ow2_ref, zg_ref, objval_ref):
    # z_g = proj(adaptive_avg_pool2d(feat, 1)); BN over the batch (length-1 sequence).
    x_pool = pool_ref[...]                                                       # (B, C)
    h = jnp.einsum('bc,oc->bo', x_pool, pw1_ref[...], preferred_element_type=jnp.float32)
    mu = jnp.mean(h, axis=0, keepdims=True)
    var = jnp.mean((h - mu) ** 2, axis=0, keepdims=True)
    hn = jnp.maximum((h - mu) * jax.lax.rsqrt(var + BN_EPS) * pg1_ref[...] + pb1_ref[...], 0.0)
    zg_ref[...] = jnp.einsum('bo,do->bd', hn, pw2_ref[...],
                             preferred_element_type=jnp.float32)                 # (B, D)

    # obj_val = proj_obj(head-contracted object values); v is (B*Qh, C) (channels on lanes),
    # BN over the flattened (B, Qh) sample axis -- all matmuls stay 2-D.
    v = objraw_ref[...]
    h2 = jnp.einsum('nc,oc->no', v, ow1_ref[...], preferred_element_type=jnp.float32)
    mu2 = jnp.mean(h2, axis=0, keepdims=True)
    var2 = jnp.mean((h2 - mu2) ** 2, axis=0, keepdims=True)
    hn2 = jnp.maximum((h2 - mu2) * jax.lax.rsqrt(var2 + BN_EPS) * og1_ref[...] + ob1_ref[...], 0.0)
    objval_ref[...] = jnp.einsum('no,do->nd', hn2, ow2_ref[...],
                                 preferred_element_type=jnp.float32)             # (B*Qh, D)


def _heads_pass(x_pool, obj_raw2d, pw1, pg1, pb1, pw2, ow1, og1, ob1, ow2):
    # TODO(synk): at very large B*C this head stage should itself be tiled with the same
    # two-pass BN scheme; tensors here are tiny at typical neck sizes so it stays gridless.
    B, _ = x_pool.shape
    N = obj_raw2d.shape[0]
    D = pw2.shape[0]
    args = (x_pool, obj_raw2d, pw1, pg1, pb1, pw2, ow1, og1, ob1, ow2)
    vspec = lambda: pl.BlockSpec(memory_space=pltpu.MemorySpace.VMEM)
    return pl.pallas_call(
        _heads_kernel,
        out_shape=(jax.ShapeDtypeStruct((B, D), jnp.float32),
                   jax.ShapeDtypeStruct((N, D), jnp.float32)),
        in_specs=[vspec() for _ in args],
        out_specs=(vspec(), vspec()),
    )(*args)


# ------------------------------------ forward wrapper ------------------------------------

def encoder_obj_forward(im, params, *, num_heads=8, scale=1.0, l_tile=None, exp_bf16=False):
    """EncoderObj.forward: backbone -> ObjectNeck (group path). Returns (z_g, obj_val, out).

    exp_bf16: set True on v6e/v7x (bf16 EUP) to halve the softmax-exp cost; left off by
    default so the chip-independent f32-exp path is what the accuracy check exercises.
    """
    B, Cin, H, W = im.shape
    L = H * W
    C = params['w_bb'].shape[0]
    hid = params['pix_w1'].shape[0]
    D = params['pix_w2'].shape[0]
    assert C % num_heads == 0 and D % num_heads == 0

    budget = _vmem_budget_bytes()
    if l_tile is None:
        l_tile = _pick_l_tile(L, Cin, C, hid, D, num_heads, budget)
    assert L % l_tile == 0, "spatial size must be a multiple of the L tile"
    cparams = _grid_compiler_params(
        _pass2_step_bytes(Cin, C, hid, D, num_heads, l_tile), budget)

    im3 = im.reshape(B, Cin, L)
    # bf16 inputs for the big MXU matmuls (f32 accumulation in-kernel); vector math stays f32.
    w1_bf = params['pix_w1'].astype(jnp.bfloat16)
    w2_bf = params['pix_w2'].astype(jnp.bfloat16)

    # pass 1: per-batch sum_L(feat) and sum_L(h1^2)
    featsum, h1sq = _stats_pass(im3, params['w_bb'], w1_bf,
                                l_tile=l_tile, compiler_params=cparams)

    # Hoisted train-mode BN affine for proj_pixel (tiny XLA ops; sum(h1) == W1 @ sum(feat)
    # exactly because the conv is linear).  Use the bf16-rounded W1 so the mean matches the
    # in-kernel bf16 matmul as closely as possible.
    inv_count = 1.0 / (B * L)
    feat_tot = jnp.sum(featsum[:, :, 0], axis=0)                             # (C,)
    mu = (w1_bf.astype(jnp.float32) @ feat_tot) * inv_count                  # (hid,)
    var = jnp.maximum(jnp.sum(h1sq[:, :, 0], axis=0) * inv_count - mu * mu, 0.0)
    inv_std = jax.lax.rsqrt(var + BN_EPS)
    g1 = params['pix_g1'][:, 0]
    bn_a = (g1 * inv_std)[:, None]                                           # (hid, 1)
    bn_b = (params['pix_b1'][:, 0] - mu * g1 * inv_std)[:, None]             # (hid, 1)

    # pass 2: fused proj_pixel + flash softmax + per-head value contraction
    objraw = _pixel_pass(im3, params['w_bb'], w1_bf, bn_a, bn_b, w2_bf,
                         num_heads=num_heads, scale=scale, l_tile=l_tile,
                         exp_bf16=exp_bf16, compiler_params=cparams)          # (B, D, Ch)

    Qh, Ch = D // num_heads, C // num_heads
    # wrapper-side layout plumbing: (B, H*Qh, Ch) -> (B*Qh, C) with channels on lanes
    obj_raw2d = (objraw.reshape(B, num_heads, Qh, Ch)
                 .transpose(0, 2, 1, 3).reshape(B * Qh, C))

    hid_p = params['proj_w1'].shape[0]
    hid_o = params['obj_w1'].shape[0]
    zg, objval = _heads_pass(
        featsum[:, :, 0] * (1.0 / L), obj_raw2d,
        params['proj_w1'], params['proj_g1'].reshape(1, hid_p),
        params['proj_b1'].reshape(1, hid_p), params['proj_w2'],
        params['obj_w1'], params['obj_g1'].reshape(1, hid_o),
        params['obj_b1'].reshape(1, hid_o), params['obj_w2'])

    z_g = zg[:, :, None]                                       # (B, D, 1)   module layout
    obj_val = jnp.transpose(objval.reshape(B, Qh, D), (0, 2, 1))   # (B, D, Qh)
    return z_g, obj_val, {}                                     # `out` dict empty for 'group'


# ------------------------------------ pure-JAX reference ------------------------------------

def _reference_forward(im, p, *, num_heads=8, scale=1.0):
    B, Cin, H, W = im.shape
    L = H * W
    x = jnp.maximum(jnp.einsum('oc,bcl->bol', p['w_bb'], im.reshape(B, Cin, L)), 0.0)

    def mlp(v, w1, g1, b1, w2):
        h = jnp.einsum('oc,bcl->bol', w1, v)
        mu = h.mean(axis=(0, 2), keepdims=True)
        var = ((h - mu) ** 2).mean(axis=(0, 2), keepdims=True)
        h = (h - mu) / jnp.sqrt(var + BN_EPS) * g1[None] + b1[None]
        h = jnp.maximum(h, 0.0)
        return jnp.einsum('oc,bcl->bol', w2, h)

    x_pool = x.mean(axis=2, keepdims=True)
    z_g = mlp(x_pool, p['proj_w1'], p['proj_g1'], p['proj_b1'], p['proj_w2'])
    z_feat = mlp(x, p['pix_w1'], p['pix_g1'], p['pix_b1'], p['pix_w2'])
    nrm = jnp.sqrt((z_feat ** 2).sum(axis=1, keepdims=True))
    a = z_feat / jnp.maximum(nrm, 1e-12) / scale
    D = z_feat.shape[1]
    a = jax.nn.softmax(a.reshape(B, num_heads, D // num_heads, L), axis=-1)
    xh = x.reshape(B, num_heads, -1, L)
    obj_val = jnp.einsum('bhcl,bhql->bhcq', xh, a).reshape(B, x.shape[1], D // num_heads)
    obj_val = mlp(obj_val, p['obj_w1'], p['obj_g1'], p['obj_b1'], p['obj_w2'])
    return z_g, obj_val


# ------------------------------------------- main -------------------------------------------

if __name__ == "__main__":
    B, Cin, H, W = 2, 3, 16, 16
    in_dim, hid_dim, out_dim, num_heads, scale = 32, 32, 32, 8, 1.0

    key = jax.random.PRNGKey(0)
    ks = jax.random.split(key, 8)

    def kaiming(k, o, i):
        return jax.random.normal(k, (o, i), jnp.float32) * jnp.sqrt(2.0 / i)

    params = {
        'w_bb': kaiming(ks[1], in_dim, Cin),
        'proj_w1': kaiming(ks[2], hid_dim, in_dim),
        'proj_g1': jnp.ones((hid_dim, 1), jnp.float32),
        'proj_b1': jnp.zeros((hid_dim, 1), jnp.float32),
        'proj_w2': kaiming(ks[3], out_dim, hid_dim),
        'pix_w1': kaiming(ks[4], hid_dim, in_dim),
        'pix_g1': jnp.ones((hid_dim, 1), jnp.float32),
        'pix_b1': jnp.zeros((hid_dim, 1), jnp.float32),
        'pix_w2': kaiming(ks[5], out_dim, hid_dim),
        'obj_w1': kaiming(ks[6], hid_dim, in_dim),
        'obj_g1': jnp.ones((hid_dim, 1), jnp.float32),
        'obj_b1': jnp.zeros((hid_dim, 1), jnp.float32),
        'obj_w2': kaiming(ks[7], out_dim, hid_dim),
    }

    im = jax.random.normal(ks[0], (B, Cin, H, W), jnp.float32)

    # l_tile=128 so the test exercises the multi-tile online softmax / two-pass BN (L=256 -> 2 tiles)
    z_g, obj_val, _ = encoder_obj_forward(im, params, num_heads=num_heads, scale=scale, l_tile=128)
    jax.block_until_ready((z_g, obj_val))

    z_g_ref, obj_val_ref = _reference_forward(im, params, num_heads=num_heads, scale=scale)
    assert z_g.shape == (B, out_dim, 1) and obj_val.shape == (B, out_dim, out_dim // num_heads)
    # z_g path is pure f32; the pixel/obj_val path feeds bf16 operands to the MXU (f32 accum),
    # hence the looser tolerance on obj_val.
    assert jnp.allclose(z_g, z_g_ref, rtol=1e-2, atol=1e-2), "z_g mismatch vs reference"
    assert jnp.allclose(obj_val, obj_val_ref, rtol=3e-2, atol=3e-2), "obj_val mismatch vs reference"

    print("KERNEL_OK")
</pallas_src>

<mosaic_0001>
module attributes {stable_mosaic.version = 11 : i64} {
  func.func @_stats_kernel(%arg0: i32, %arg1: i32, %arg2: memref<1x3x128xf32, #tpu.memory_space<vmem>>, %arg3: memref<32x3xf32, #tpu.memory_space<vmem>>, %arg4: memref<32x32xbf16, #tpu.memory_space<vmem>>, %arg5: memref<1x32x1xf32, #tpu.memory_space<vmem>>, %arg6: memref<1x32x1xf32, #tpu.memory_space<vmem>>) attributes {dimension_semantics = [#tpu.dimension_semantics<parallel>, #tpu.dimension_semantics<arbitrary>], iteration_bounds = array<i64: 2, 2>, scalar_prefetch = 0 : i64, scratch_operands = 0 : i64, tpu.core_type = #tpu.core_type<tc>, window_params = [{transform_indices = @transform_0, window_bounds = array<i64: 1, 3, 128>}, {pipeline_mode = #tpu.pipeline_mode<synchronous>, transform_indices = @transform_1, window_bounds = array<i64: 32, 3>}, {pipeline_mode = #tpu.pipeline_mode<synchronous>, transform_indices = @transform_2, window_bounds = array<i64: 32, 32>}, {transform_indices = @transform_3, window_bounds = array<i64: 1, 32, 1>}, {transform_indices = @transform_4, window_bounds = array<i64: 1, 32, 1>}]} {
    %c0_i32 = arith.constant 0 : i32
    %0 = arith.cmpi eq, %arg1, %c0_i32 : i32
    %1 = arith.extui %0 : i1 to i32
    %c0_i32_0 = arith.constant 0 : i32
    %2 = arith.cmpi ne, %1, %c0_i32_0 : i32
    scf.if %2 {
      %cst_22 = arith.constant 0.000000e+00 : f32
      %45 = vector.broadcast %cst_22 : f32 to vector<1x32x1xf32>
      %c0_23 = arith.constant 0 : index
      %c0_24 = arith.constant 0 : index
      %c0_25 = arith.constant 0 : index
      %46 = vector.load %arg5[%c0_23, %c0_24, %c0_25] : memref<1x32x1xf32, #tpu.memory_space<vmem>>, vector<1x32x1xf32>
      tpu.vector_store %arg5[%c0_23, %c0_24, %c0_25], %45 {strides = array<i32>} : memref<1x32x1xf32, #tpu.memory_space<vmem>>, vector<1x32x1xf32>,
      %cst_26 = arith.constant 0.000000e+00 : f32
      %47 = vector.broadcast %cst_26 : f32 to vector<1x32x1xf32>
      %c0_27 = arith.constant 0 : index
      %c0_28 = arith.constant 0 : index
      %c0_29 = arith.constant 0 : index
      %48 = vector.load %arg6[%c0_27, %c0_28, %c0_29] : memref<1x32x1xf32, #tpu.memory_space<vmem>>, vector<1x32x1xf32>
      tpu.vector_store %arg6[%c0_27, %c0_28, %c0_29], %47 {strides = array<i32>} : memref<1x32x1xf32, #tpu.memory_space<vmem>>, vector<1x32x1xf32>,
    } else {
    }
    %c0 = arith.constant 0 : index
    %c0_1 = arith.constant 0 : index
    %3 = vector.load %arg3[%c0, %c0_1] : memref<32x3xf32, #tpu.memory_space<vmem>>, vector<32x3xf32>
    %c0_2 = arith.constant 0 : index
    %c0_3 = arith.constant 0 : index
    %c0_4 = arith.constant 0 : index
    %4 = vector.load %arg2[%c0_2, %c0_3, %c0_4] : memref<1x3x128xf32, #tpu.memory_space<vmem>>, vector<1x3x128xf32>
    %5 = vector.shape_cast %4 : vector<1x3x128xf32> to vector<3x128xf32>
    %6 = vector.extract_strided_slice %3 {offsets = [0, 0], sizes = [32, 1], strides = [1, 1]} : vector<32x3xf32> to vector<32x1xf32>
    %7 = vector.extract_strided_slice %5 {offsets = [0, 0], sizes = [1, 128], strides = [1, 1]} : vector<3x128xf32> to vector<1x128xf32>
    %8 = vector.broadcast %6 : vector<32x1xf32> to vector<32x128xf32>
    %9 = vector.broadcast %7 : vector<1x128xf32> to vector<32x128xf32>
    %10 = arith.mulf %8, %9 : vector<32x128xf32>
    %11 = vector.extract_strided_slice %3 {offsets = [0, 1], sizes = [32, 1], strides = [1, 1]} : vector<32x3xf32> to vector<32x1xf32>
    %12 = vector.extract_strided_slice %5 {offsets = [1, 0], sizes = [1, 128], strides = [1, 1]} : vector<3x128xf32> to vector<1x128xf32>
    %13 = vector.broadcast %11 : vector<32x1xf32> to vector<32x128xf32>
    %14 = vector.broadcast %12 : vector<1x128xf32> to vector<32x128xf32>
    %15 = arith.mulf %13, %14 : vector<32x128xf32>
    %16 = arith.addf %10, %15 : vector<32x128xf32>
    %17 = vector.extract_strided_slice %3 {offsets = [0, 2], sizes = [32, 1], strides = [1, 1]} : vector<32x3xf32> to vector<32x1xf32>
    %18 = vector.extract_strided_slice %5 {offsets = [2, 0], sizes = [1, 128], strides = [1, 1]} : vector<3x128xf32> to vector<1x128xf32>
    %19 = vector.broadcast %17 : vector<32x1xf32> to vector<32x128xf32>
    %20 = vector.broadcast %18 : vector<1x128xf32> to vector<32x128xf32>
    %21 = arith.mulf %19, %20 : vector<32x128xf32>
    %22 = arith.addf %16, %21 : vector<32x128xf32>
    %cst = arith.constant 0.000000e+00 : f32
    %23 = vector.broadcast %cst : f32 to vector<32x128xf32>
    %24 = arith.maximumf %22, %23 : vector<32x128xf32>
    %c0_5 = arith.constant 0 : index
    %c0_6 = arith.constant 0 : index
    %25 = vector.load %arg4[%c0_5, %c0_6] : memref<32x32xbf16, #tpu.memory_space<vmem>>, vector<32x32xbf16>
    %26 = arith.truncf %24 : vector<32x128xf32> to vector<32x128xbf16>
    %cst_7 = arith.constant dense<0.000000e+00> : vector<32x128xf32>
    %27 = tpu.matmul %25, %26, %cst_7 {dimension_numbers = #tpu.dot_dimension_numbers<[1], [0], [0], [1], [0, 0, 1, 1], [], []>} : vector<32x32xbf16>, vector<32x128xbf16>, vector<32x128xf32> -> vector<32x128xf32>
    %c0_8 = arith.constant 0 : index
    %c0_9 = arith.constant 0 : index
    %c0_10 = arith.constant 0 : index
    %28 = vector.load %arg5[%c0_8, %c0_9, %c0_10] : memref<1x32x1xf32, #tpu.memory_space<vmem>>, vector<1x32x1xf32>
    %29 = vector.shape_cast %28 : vector<1x32x1xf32> to vector<32x1xf32>
    %cst_11 = arith.constant dense<0.000000e+00> : vector<32xf32>
    %30 = vector.multi_reduction <add>, %24, %cst_11 [1] : vector<32x128xf32> to vector<32xf32>
    %31 = vector.shape_cast %30 : vector<32xf32> to vector<32x1xf32>
    %32 = arith.addf %29, %31 : vector<32x1xf32>
    %c0_12 = arith.constant 0 : index
    %c0_13 = arith.constant 0 : index
    %c0_14 = arith.constant 0 : index
    %33 = vector.load %arg5[%c0_12, %c0_13, %c0_14] : memref<1x32x1xf32, #tpu.memory_space<vmem>>, vector<1x32x1xf32>
    %34 = vector.shape_cast %33 : vector<1x32x1xf32> to vector<32x1xf32>
    %35 = vector.shape_cast %32 : vector<32x1xf32> to vector<1x32x1xf32>
    tpu.vector_store %arg5[%c0_12, %c0_13, %c0_14], %35 {strides = array<i32>} : memref<1x32x1xf32, #tpu.memory_space<vmem>>, vector<1x32x1xf32>,
    %c0_15 = arith.constant 0 : index
    %c0_16 = arith.constant 0 : index
    %c0_17 = arith.constant 0 : index
    %36 = vector.load %arg6[%c0_15, %c0_16, %c0_17] : memref<1x32x1xf32, #tpu.memory_space<vmem>>, vector<1x32x1xf32>
    %37 = vector.shape_cast %36 : vector<1x32x1xf32> to vector<32x1xf32>
    %38 = arith.mulf %27, %27 : vector<32x128xf32>
    %cst_18 = arith.constant dense<0.000000e+00> : vector<32xf32>
    %39 = vector.multi_reduction <add>, %38, %cst_18 [1] : vector<32x128xf32> to vector<32xf32>
    %40 = vector.shape_cast %39 : vector<32xf32> to vector<32x1xf32>
    %41 = arith.addf %37, %40 : vector<32x1xf32>
    %c0_19 = arith.constant 0 : index
    %c0_20 = arith.constant 0 : index
    %c0_21 = arith.constant 0 : index
    %42 = vector.load %arg6[%c0_19, %c0_20, %c0_21] : memref<1x32x1xf32, #tpu.memory_space<vmem>>, vector<1x32x1xf32>
    %43 = vector.shape_cast %42 : vector<1x32x1xf32> to vector<32x1xf32>
    %44 = vector.shape_cast %41 : vector<32x1xf32> to vector<1x32x1xf32>
    tpu.vector_store %arg6[%c0_19, %c0_20, %c0_21], %44 {strides = array<i32>} : memref<1x32x1xf32, #tpu.memory_space<vmem>>, vector<1x32x1xf32>,
    return
  }
  func.func @transform_0(%arg0: i32, %arg1: i32) -> (i32, i32, i32) {
    %c0_i32 = arith.constant 0 : i32
    %c0_i32_0 = arith.constant 0 : i32
    return %arg0, %c0_i32, %arg1 : i32, i32, i32
  }
  func.func @transform_1(%arg0: i32, %arg1: i32) -> (i32, i32) {
    %c0_i32 = arith.constant 0 : i32
    %c0_i32_0 = arith.constant 0 : i32
    %c0_i32_1 = arith.constant 0 : i32
    return %c0_i32, %c0_i32_0 : i32, i32
  }
  func.func @transform_2(%arg0: i32, %arg1: i32) -> (i32, i32) {
    %c0_i32 = arith.constant 0 : i32
    %c0_i32_0 = arith.constant 0 : i32
    %c0_i32_1 = arith.constant 0 : i32
    return %c0_i32, %c0_i32_0 : i32, i32
  }
  func.func @transform_3(%arg0: i32, %arg1: i32) -> (i32, i32, i32) {
    %c0_i32 = arith.constant 0 : i32
    %c0_i32_0 = arith.constant 0 : i32
    %c0_i32_1 = arith.constant 0 : i32
    return %arg0, %c0_i32, %c0_i32_0 : i32, i32, i32
  }
  func.func @transform_4(%arg0: i32, %arg1: i32) -> (i32, i32, i32) {
    %c0_i32 = arith.constant 0 : i32
    %c0_i32_0 = arith.constant 0 : i32
    %c0_i32_1 = arith.constant 0 : i32
    return %arg0, %c0_i32, %c0_i32_0 : i32, i32, i32
  }
}

</mosaic_0001>

<llo_original>
// kernel: tpu_custom_call.1
$region0: #{tpu_custom_call.1}
  #allocation0 [shape = 'u32[]', space=smem, size = 0x4, offset = 0x4, fixed_abs, tag = 'smem constant byte address 0x4 - core index']
  #allocation1 [shape = 'u32[144,128]{1,0:T(1,128)}', space=vmem, size = 0x12000, scoped, tag = 'internal scratch']
  %s0 = inlined_call_operand.vmem [shape: f32[2,3,256], index: 0, kind: input, shape index: {}]
  %s1 = inlined_call_operand.vmem [shape: f32[32,3], index: 1, kind: input, shape index: {}]
  %s2 = inlined_call_operand.vmem [shape: bf16[32,32], index: 2, kind: input, shape index: {}]
  %s3 = inlined_call_operand.vmem [shape: f32[2,32,1], index: 3, kind: output, shape index: {0}]
  %s4 = inlined_call_operand.vmem [shape: f32[2,32,1], index: 4, kind: output, shape index: {1}]
  %5 = xla_tuple %s3, %s4
  %s6 = sld [smem:[#allocation0]]
  $region57: #{tpu_custom_call.1} parent=0
    _
  %s8 = ssub.s32 1, %s6
  %s9 = scalar_select 0, %s8, %s6
  loop: start=0, step=1, limit=6
  $region2: #{tpu_custom_call.1} parent=0 // loop_pre_header
    _
  $region3: #{tpu_custom_call.1} parent=0 // loop_header
    %s11 = sphi 0, %s15
    %p12 = scmp.ge.s32.totalorder %s11, 6
    %s18 = sphi 0, %s30
    %s19 = sphi 0, %s26
    %s20 = sphi 0, %s18
    %s21 = sphi 0, %s19
    %s22 = sphi 0, %s20
    %s23 = sphi 0, %s21
    %s35 = sphi 0, %s37
    %s38 = sphi 0, %s35
    %s39 = sphi 0, %s38
    %s55 = sphi 0, %s39
    %s59 = sphi 0, %s59
    %s61 = sphi 0, %s59
    %s62 = sphi 0, %s61
    %s76 = sphi 0, %s62
    %s80 = sphi 0, %s80
    %s82 = sphi 0, %s80
    %s83 = sphi 0, %s82
    %s97 = sphi 0, %s83
    %s103 = sphi 0, %s105
    %s106 = sphi 0, %s103
    %s107 = sphi 0, %s106
    %s123 = sphi 0, %s107
    %s129 = sphi 0, %s131
    %s132 = sphi 0, %s129
    %s133 = sphi 0, %s132
    %s149 = sphi 0, %s133
  $region4: #{tpu_custom_call.1} parent=0 // loop_header_branch
    %14 = sbr.rel (%p12) target = $region8
  $region5: #{tpu_custom_call.1} parent=0 // loop_body
    %s16 = ssub.s32 %s11, 1
    %s17 = ssub.s32 %s11, 2
    %s24 = sadd.s32 1, %s19
    %p25 = scmp.ge.s32.totalorder %s24, 2
    %s26 = scalar_select %p25, 0, %s24
    %s27 = sadd.s32 1, %s18
    %s28 = scalar_select %p25, %s27, %s18
    %p29 = scmp.ge.s32.totalorder %s28, 2
    %s30 = scalar_select %p29, 0, %s28
    %s31 = ssub.s32 %s18, %s30
    %s32 = ssub.s32 %s19, %s26
    %s33 = sor.u32 %s31, %s32
    %p34 = scmp.eq.s32.totalorder %s33, 0
    %s36 = sadd.s32 %s35, 1
    %s37 = scalar_select %p34, %s35, %s36
    %p40 = pneg %p34
    %p41 = scmp.eq.s32.totalorder %s11, 3
    %p42 = por %p40, %p41
    %p43 = scmp.ne.s32.totalorder %s35, %s38
    %p44 = scmp.eq.s32.totalorder %s11, 0
    %p45 = por %p43, %p44
    %p46 = scmp.ne.s32.totalorder %s35, %s38
    %p47 = scmp.eq.s32.totalorder %s16, 3
    %p48 = por %p46, %p47
    %p49 = scmp.ne.s32.totalorder %s38, %s39
    %p50 = scmp.eq.s32.totalorder %s16, 0
    %p51 = por %p49, %p50
    %p52 = scmp.ne.s32.totalorder %s38, %s39
    %p53 = scmp.eq.s32.totalorder %s17, 3
    %p54 = por %p52, %p53
    %p56 = scmp.ne.s32.totalorder %s39, %s55
    %p57 = scmp.eq.s32.totalorder %s17, 0
    %p58 = por %p56, %p57
    %s60 = sadd.s32 %s59, 1
    %p63 = scmp.eq.s32.totalorder %s11, 3
    %p64 = scmp.ne.s32.totalorder %s59, %s61
    %p65 = scmp.eq.s32.totalorder %s11, 0
    %p66 = por %p64, %p65
    %p67 = scmp.ne.s32.totalorder %s59, %s61
    %p68 = scmp.eq.s32.totalorder %s16, 3
    %p69 = por %p67, %p68
    %p70 = scmp.ne.s32.totalorder %s61, %s62
    %p71 = scmp.eq.s32.totalorder %s16, 0
    %p72 = por %p70, %p71
    %p73 = scmp.ne.s32.totalorder %s61, %s62
    %p74 = scmp.eq.s32.totalorder %s17, 3
    %p75 = por %p73, %p74
    %p77 = scmp.ne.s32.totalorder %s62, %s76
    %p78 = scmp.eq.s32.totalorder %s17, 0
    %p79 = por %p77, %p78
    %s81 = sadd.s32 %s80, 1
    %p84 = scmp.eq.s32.totalorder %s11, 3
    %p85 = scmp.ne.s32.totalorder %s80, %s82
    %p86 = scmp.eq.s32.totalorder %s11, 0
    %p87 = por %p85, %p86
    %p88 = scmp.ne.s32.totalorder %s80, %s82
    %p89 = scmp.eq.s32.totalorder %s16, 3
    %p90 = por %p88, %p89
    %p91 = scmp.ne.s32.totalorder %s82, %s83
    %p92 = scmp.eq.s32.totalorder %s16, 0
    %p93 = por %p91, %p92
    %p94 = scmp.ne.s32.totalorder %s82, %s83
    %p95 = scmp.eq.s32.totalorder %s17, 3
    %p96 = por %p94, %p95
    %p98 = scmp.ne.s32.totalorder %s83, %s97
    %p99 = scmp.eq.s32.totalorder %s17, 0
    %p100 = por %p98, %p99
    %s101 = ssub.s32 %s18, %s30
    %p102 = scmp.eq.s32.totalorder %s101, 0
    %s104 = sadd.s32 %s103, 1
    %s105 = scalar_select %p102, %s103, %s104
    %p108 = pneg %p102
    %p109 = scmp.eq.s32.totalorder %s11, 3
    %p110 = por %p108, %p109
    %p111 = scmp.ne.s32.totalorder %s103, %s106
    %p112 = scmp.eq.s32.totalorder %s11, 0
    %p113 = por %p111, %p112
    %p114 = scmp.ne.s32.totalorder %s103, %s106
    %p115 = scmp.eq.s32.totalorder %s16, 3
    %p116 = por %p114, %p115
    %p117 = scmp.ne.s32.totalorder %s106, %s107
    %p118 = scmp.eq.s32.totalorder %s16, 0
    %p119 = por %p117, %p118
    %p120 = scmp.ne.s32.totalorder %s106, %s107
    %p121 = scmp.eq.s32.totalorder %s17, 3
    %p122 = por %p120, %p121
    %p124 = scmp.ne.s32.totalorder %s107, %s123
    %p125 = scmp.eq.s32.totalorder %s17, 0
    %p126 = por %p124, %p125
    %s127 = ssub.s32 %s18, %s30
    %p128 = scmp.eq.s32.totalorder %s127, 0
    %s130 = sadd.s32 %s129, 1
    %s131 = scalar_select %p128, %s129, %s130
    %p134 = pneg %p128
    %p135 = scmp.eq.s32.totalorder %s11, 3
    %p136 = por %p134, %p135
    %p137 = scmp.ne.s32.totalorder %s129, %s132
    %p138 = scmp.eq.s32.totalorder %s11, 0
    %p139 = por %p137, %p138
    %p140 = scmp.ne.s32.totalorder %s129, %s132
    %p141 = scmp.eq.s32.totalorder %s16, 3
    %p142 = por %p140, %p141
    %p143 = scmp.ne.s32.totalorder %s132, %s133
    %p144 = scmp.eq.s32.totalorder %s16, 0
    %p145 = por %p143, %p144
    %p146 = scmp.ne.s32.totalorder %s132, %s133
    %p147 = scmp.eq.s32.totalorder %s17, 3
    %p148 = por %p146, %p147
    %p150 = scmp.ne.s32.totalorder %s133, %s149
    %p151 = scmp.eq.s32.totalorder %s17, 0
    %p152 = por %p150, %p151
    %p153 = scmp.le.s32.totalorder 1, %s11
    %p154 = scmp.lt.s32.totalorder %s11, 5
    %p155 = pnand %p153, %p154
    %p156 = pneg %p155
    // Predicated region
    $region9: #{tpu_custom_call.1} parent=5 // pred_check
      _
    $region10: #{tpu_custom_call.1} parent=5 // pred_check_branch
      %158 = sbr.rel (%p155) target = $region12
    $region11: #{tpu_custom_call.1} parent=5 // pred_region
      %s159 = ssub.s32 %s11, 1
      // Predicated region
      $region13: #{tpu_custom_call.1} parent=11 // pred_check
        %p160 = pneg %p72
      $region14: #{tpu_custom_call.1} parent=11 // pred_check_branch
        %162 = sbr.rel (%p160) target = $region16
      $region15: #{tpu_custom_call.1} parent=11 // pred_region
        _
      $region16: #{tpu_custom_call.1} parent=11 // pred_fallthru
        _
      // Predicated region
      $region17: #{tpu_custom_call.1} parent=11 // pred_check
        %p163 = pneg %p93
      $region18: #{tpu_custom_call.1} parent=11 // pred_check_branch
        %165 = sbr.rel (%p163) target = $region20
      $region19: #{tpu_custom_call.1} parent=11 // pred_region
        _
      $region20: #{tpu_custom_call.1} parent=11 // pred_fallthru
        _
    $region12: #{tpu_custom_call.1} parent=5 // pred_fallthru
      _
    %p166 = scmp.lt.s32.totalorder %s11, 4
    // Predicated region
    $region21: #{tpu_custom_call.1} parent=5 // pred_check
      %p167 = pneg %p166
    $region22: #{tpu_custom_call.1} parent=5 // pred_check_branch
      %169 = sbr.rel (%p167) target = $region24
    $region23: #{tpu_custom_call.1} parent=5 // pred_region
      // Predicated region
      $region25: #{tpu_custom_call.1} parent=23 // pred_check
        %p170 = pneg %p45
      $region26: #{tpu_custom_call.1} parent=23 // pred_check_branch
        %172 = sbr.rel (%p170) target = $region28
      $region27: #{tpu_custom_call.1} parent=23 // pred_region
        %p173 = scmp.lt.s32.totalorder %s18, 1
        %s174 = scalar_select %p173, %s18, 1
        %p175 = scmp.lt.s32.totalorder %s19, 1
        %s176 = scalar_select %p175, %s19, 1
        %s177 = smul.addr %s174, 2
        %s178 = sadd.s32 %s176, %s177
        %s179 = smul.addr %s178, 4
        %s180 = scalar_lea.vmem %s0, %s179
      $region28: #{tpu_custom_call.1} parent=23 // pred_fallthru
        _
    $region24: #{tpu_custom_call.1} parent=5 // pred_fallthru
      _
    %p181 = scmp.le.s32.totalorder 1, %s11
    %p182 = scmp.lt.s32.totalorder %s11, 5
    %p183 = pnand %p181, %p182
    %p184 = pneg %p183
    // Predicated region
    $region29: #{tpu_custom_call.1} parent=5 // pred_check
      _
    $region30: #{tpu_custom_call.1} parent=5 // pred_check_branch
      %186 = sbr.rel (%p183) target = $region32
    $region31: #{tpu_custom_call.1} parent=5 // pred_region
      %s187 = ssub.s32 %s11, 1
      %p188 = scmp.lt.s32.totalorder %s20, 1
      %s189 = scalar_select %p188, %s20, 1
      %p190 = scmp.lt.s32.totalorder %s21, 1
      %s191 = scalar_select %p190, %s21, 1
      %s192 = smul.addr %s189, 2
      %s193 = sadd.s32 %s191, %s192
      %s194 = smul.addr %s193, 4
      %s195 = scalar_lea.vmem %s0, %s194
      %p196 = pneg %p51
      %p197 = pneg %p48
      %p198 = pneg %p72
      %p199 = pneg %p69
      %p200 = pneg %p93
      %p201 = pneg %p90
      %p202 = pneg %p119
      %p203 = pneg %p116
      %p204 = scmp.lt.s32.totalorder %s20, 1
      %s205 = scalar_select %p204, %s20, 1
      %s206 = smul.addr %s205, 4
      %s207 = smul.addr %s206, 8
      %s208 = scalar_lea.vmem %s3, %s207
      %p209 = pneg %p145
      %p210 = pneg %p142
      %p211 = scmp.lt.s32.totalorder %s20, 1
      %s212 = scalar_select %p211, %s20, 1
      %s213 = smul.addr %s212, 4
      %s214 = smul.addr %s213, 8
      %s215 = scalar_lea.vmem %s4, %s214
      %p216 = scmp.lt.s32.totalorder %s20, 1
      %s217 = scalar_select %p216, %s20, 1
      %p218 = scmp.lt.s32.totalorder %s21, 1
      %s219 = scalar_select %p218, %s21, 1
      %s220 = smul.addr %s217, 2
      %s221 = sadd.s32 %s219, %s220
      %s222 = smul.addr %s221, 4
      %s223 = scalar_lea.vmem %s0, %s222
      %p224 = scmp.lt.s32.totalorder %s20, 1
      %s225 = scalar_select %p224, %s20, 1
      %s226 = smul.addr %s225, 4
      %s227 = smul.addr %s226, 8
      %s228 = scalar_lea.vmem %s3, %s227
      %p229 = scmp.lt.s32.totalorder %s20, 1
      %s230 = scalar_select %p229, %s20, 1
      %s231 = smul.addr %s230, 4
      %s232 = smul.addr %s231, 8
      %s233 = scalar_lea.vmem %s4, %s232
      %p235 = scmp.eq.s32.totalorder %s21, 0
      // Predicated region
      $region33: #{tpu_custom_call.1} parent=31 // pred_check
        %p236 = pneg %p235
      $region34: #{tpu_custom_call.1} parent=31 // pred_check_branch
        %238 = sbr.rel (%p236) target = $region36
      $region35: #{tpu_custom_call.1} parent=31 // pred_region
        %vm239 = vcmask 7168
        %240 = vst.msk [vmem:[%s228] sm:$0xff] %vm239, 0.0
        %241 = vst.msk [vmem:[%s228 + $0x8] sm:$0xff] %vm239, 0.0
        %242 = vst.msk [vmem:[%s228 + $0x10] sm:$0xff] %vm239, 0.0
        %243 = vst.msk [vmem:[%s228 + $0x18] sm:$0xff] %vm239, 0.0
        %244 = vst.msk [vmem:[%s233] sm:$0xff] %vm239, 0.0
        %245 = vst.msk [vmem:[%s233 + $0x8] sm:$0xff] %vm239, 0.0
        %246 = vst.msk [vmem:[%s233 + $0x10] sm:$0xff] %vm239, 0.0
        %247 = vst.msk [vmem:[%s233 + $0x18] sm:$0xff] %vm239, 0.0
      $region36: #{tpu_custom_call.1} parent=31 // pred_fallthru
        _
      %v248 = vld [vmem:[%s1] sm:$0xff]
      %v249 = vld [vmem:[%s1 + $0x8] sm:$0xff]
      %v250 = vld [vmem:[%s1 + $0x10] sm:$0xff]
      %v251 = vld [vmem:[%s1 + $0x18] sm:$0xff]
      %v252 = vld [vmem:[%s223] sm:$0x7]
      %254 = vset.pattern.permute.xlu0 0
      %255 = vperm.xlu0 %254, %v248
      %v256 = vpop.permute.xlu0 %255
      %259 = vset.pattern.permute.xlu0 0
      %260 = vperm.xlu0 %259, %v249
      %v261 = vpop.permute.xlu0 %260
      %264 = vset.pattern.permute.xlu0 0
      %265 = vperm.xlu0 %264, %v250
      %v266 = vpop.permute.xlu0 %265
      %269 = vset.pattern.permute.xlu0 0
      %270 = vperm.xlu0 %269, %v251
      %v271 = vpop.permute.xlu0 %270
      %v273 = vlaneseq
      %v274 = vshrl.u32 %v273, 7
      %v275 = vsub.s32 0, %v274
      %v276 = vrot.slane %v252, %v275
      %v277 = vmul.f32 %v256, %v276
      %v278 = vmul.f32 %v261, %v276
      %v279 = vmul.f32 %v266, %v276
      %v280 = vmul.f32 %v271, %v276
      %281 = vset.pattern.permute.xlu0 1
      %282 = vperm.xlu0 %281, %v248
      %v283 = vpop.permute.xlu0 %282
      %285 = vset.pattern.permute.xlu0 1
      %286 = vperm.xlu0 %285, %v249
      %v287 = vpop.permute.xlu0 %286
      %289 = vset.pattern.permute.xlu0 1
      %290 = vperm.xlu0 %289, %v250
      %v291 = vpop.permute.xlu0 %290
      %293 = vset.pattern.permute.xlu0 1
      %294 = vperm.xlu0 %293, %v251
      %v295 = vpop.permute.xlu0 %294
      %v297 = vlaneseq
      %v298 = vshrl.u32 %v297, 7
      %v299 = vsub.s32 1, %v298
      %v300 = vrot.slane %v252, %v299
      %v301 = vmul.f32 %v283, %v300
      %v302 = vmul.f32 %v287, %v300
      %v303 = vmul.f32 %v291, %v300
      %v304 = vmul.f32 %v295, %v300
      %v305 = vadd.f32 %v277, %v301
      %v306 = vadd.f32 %v278, %v302
      %v307 = vadd.f32 %v279, %v303
      %v308 = vadd.f32 %v280, %v304
      %309 = vset.pattern.permute.xlu0 2
      %310 = vperm.xlu0 %309, %v248
      %v311 = vpop.permute.xlu0 %310
      %313 = vset.pattern.permute.xlu0 2
      %314 = vperm.xlu0 %313, %v249
      %v315 = vpop.permute.xlu0 %314
      %317 = vset.pattern.permute.xlu0 2
      %318 = vperm.xlu0 %317, %v250
      %v319 = vpop.permute.xlu0 %318
      %321 = vset.pattern.permute.xlu0 2
      %322 = vperm.xlu0 %321, %v251
      %v323 = vpop.permute.xlu0 %322
      %v325 = vlaneseq
      %v326 = vshrl.u32 %v325, 7
      %v327 = vsub.s32 2, %v326
      %v328 = vrot.slane %v252, %v327
      %v329 = vmul.f32 %v311, %v328
      %v330 = vmul.f32 %v315, %v328
      %v331 = vmul.f32 %v319, %v328
      %v332 = vmul.f32 %v323, %v328
      %v333 = vadd.f32 %v305, %v329
      %v334 = vadd.f32 %v306, %v330
      %v335 = vadd.f32 %v307, %v331
      %v336 = vadd.f32 %v308, %v332
      %v337 = vmax.f32 %v333, 0.0
      %v338 = vmax.f32 %v334, 0.0
      %v339 = vmax.f32 %v335, 0.0
      %v340 = vmax.f32 %v336, 0.0
      %v341 = vld [vmem:[%s2] sm:$0xf]
      %v342 = vld [vmem:[%s2 + $0x4] sm:$0xf]
      %v343 = vld [vmem:[%s2 + $0x8] sm:$0xf]
      %v344 = vld [vmem:[%s2 + $0xc] sm:$0xf]
      %v345 = vpack.c.bf16 %v338, %v337
      %v346 = vpack.c.bf16 %v340, %v339
      %v351 = vunpack.c.l.b16 %v341
      %v352 = vunpack.c.l.b16 %v342
      %v353 = vunpack.c.l.b16 %v343
      %v354 = vunpack.c.l.b16 %v344
      %v355 = vpack.c.b16 %v352, %v351
      %v356 = vpack.c.b16 %v354, %v353
      %vm357 = vcmask 261120
      %v359 = vsel %vm357, %v355, 0
      %v362 = vsel %vm357, %v356, 0
      %364 = vmatprep.subr.bf16.mxu0 0
      %365 = vmatpush1.bf16.msra.mxu0 0
      %366 = vmatprep.subr.bf16.mxu0 0
      %367 = vmatpush1.bf16.msra.mxu0 0
      %368 = vmatprep.subr.bf16.mxu0 0
      %369 = vmatpush1.bf16.msra.mxu0 0
      %370 = vmatprep.subr.bf16.mxu0 0
      %371 = vmatpush1.bf16.msra.mxu0 0
      %372 = vmatprep.subr.bf16.mxu0 0
      %373 = vmatpush1.bf16.msra.mxu0 0
      %374 = vmatprep.subr.bf16.mxu0 0
      %375 = vmatpush1.bf16.msra.mxu0 0
      %376 = vmatprep.subr.bf16.mxu0 0
      %377 = vmatpush1.bf16.msra.mxu0 %v346
      %378 = vmatprep.subr.bf16.mxu0 0
      %379 = vmatpush1.bf16.msra.mxu0 %v345
      %380 = vmatprep.subr.bf16.mxu0 0
      %381 = vmatpush2.bf16.msra.mxu0 0
      %382 = vmatprep.subr.bf16.mxu0 0
      %383 = vmatpush2.bf16.msra.mxu0 0
      %384 = vmatprep.subr.bf16.mxu0 0
      %385 = vmatpush2.bf16.msra.mxu0 0
      %386 = vmatprep.subr.bf16.mxu0 0
      %387 = vmatpush2.bf16.msra.mxu0 0
      %388 = vmatprep.subr.bf16.mxu0 0
      %389 = vmatpush2.bf16.msra.mxu0 0
      %390 = vmatprep.subr.bf16.mxu0 0
      %391 = vmatpush2.bf16.msra.mxu0 0
      %392 = vmatprep.subr.bf16.mxu0 0
      %393 = vmatpush2.bf16.msra.mxu0 0
      %394 = vmatprep.subr.bf16.mxu0 0
      %395 = vmatpush2.bf16.msra.mxu0 0
      %396 = vmatprep.mubr.bf16.mxu0 0
      %397 = vmatmul.mubr.bf16.gmra.mxu0 %v359
      %v398 = vpop.f32.mrf.mxu0
      %v399 = vadd.f32 0.0, %v398
      %v400 = vpop.f32.mrf.mxu0
      %v401 = vpop.f32.mrf.mxu0
      %v402 = vadd.f32 0.0, %v401
      %v403 = vpop.f32.mrf.mxu0
      %404 = vmatprep.mubr.bf16.mxu0 0
      %405 = vmatmul.mubr.bf16.gmra.mxu0 %v362
      %v406 = vpop.f32.mrf.mxu0
      %v407 = vadd.f32 0.0, %v406
      %v408 = vpop.f32.mrf.mxu0
      %v409 = vpop.f32.mrf.mxu0
      %v410 = vadd.f32 0.0, %v409
      %v411 = vpop.f32.mrf.mxu0
      %412 = vdwg.mxu0
      %v413 = vld [vmem:[%s228] sm:$0xff]
      %v414 = vld [vmem:[%s228 + $0x8] sm:$0xff]
      %v415 = vld [vmem:[%s228 + $0x10] sm:$0xff]
      %v416 = vld [vmem:[%s228 + $0x18] sm:$0xff]
      %417 = vadd.xlane.f32.xlu0 %v337
      %v418 = vpop.xlane.xlu0 %417
      %419 = vadd.xlane.f32.xlu0 %v338
      %v420 = vpop.xlane.xlu0 %419
      %421 = vadd.xlane.f32.xlu0 %v339
      %v422 = vpop.xlane.xlu0 %421
      %423 = vadd.xlane.f32.xlu0 %v340
      %v424 = vpop.xlane.xlu0 %423
      %v425 = vadd.f32 %v413, %v418
      %v426 = vadd.f32 %v414, %v420
      %v427 = vadd.f32 %v415, %v422
      %v428 = vadd.f32 %v416, %v424
      %vm429 = vcmask 7168
      %430 = vst.msk [vmem:[%s228] sm:$0xff] %vm429, %v425
      %431 = vst.msk [vmem:[%s228 + $0x8] sm:$0xff] %vm429, %v426
      %432 = vst.msk [vmem:[%s228 + $0x10] sm:$0xff] %vm429, %v427
      %433 = vst.msk [vmem:[%s228 + $0x18] sm:$0xff] %vm429, %v428
      %v434 = vld [vmem:[%s233] sm:$0xff]
      %v435 = vld [vmem:[%s233 + $0x8] sm:$0xff]
      %v436 = vld [vmem:[%s233 + $0x10] sm:$0xff]
      %v437 = vld [vmem:[%s233 + $0x18] sm:$0xff]
      %v438 = vmul.f32 %v399, %v399
      %v439 = vmul.f32 %v402, %v402
      %v440 = vmul.f32 %v407, %v407
      %v441 = vmul.f32 %v410, %v410
      %442 = vadd.xlane.f32.xlu0 %v438
      %v443 = vpop.xlane.xlu0 %442
      %444 = vadd.xlane.f32.xlu0 %v439
      %v445 = vpop.xlane.xlu0 %444
      %446 = vadd.xlane.f32.xlu0 %v440
      %v447 = vpop.xlane.xlu0 %446
      %448 = vadd.xlane.f32.xlu0 %v441
      %v449 = vpop.xlane.xlu0 %448
      %v450 = vadd.f32 %v434, %v443
      %v451 = vadd.f32 %v435, %v445
      %v452 = vadd.f32 %v436, %v447
      %v453 = vadd.f32 %v437, %v449
      %454 = vst.msk [vmem:[%s233] sm:$0xff] %vm429, %v450
      %455 = vst.msk [vmem:[%s233 + $0x8] sm:$0xff] %vm429, %v451
      %456 = vst.msk [vmem:[%s233 + $0x10] sm:$0xff] %vm429, %v452
      %457 = vst.msk [vmem:[%s233 + $0x18] sm:$0xff] %vm429, %v453
      %p458 = scmp.lt.s32.totalorder %s20, 1
      %s459 = scalar_select %p458, %s20, 1
      %s460 = smul.addr %s459, 4
      %s461 = smul.addr %s460, 8
      %s462 = scalar_lea.vmem %s3, %s461
      %p463 = scmp.lt.s32.totalorder %s20, 1
      %s464 = scalar_select %p463, %s20, 1
      %s465 = smul.addr %s464, 4
      %s466 = smul.addr %s465, 8
      %s467 = scalar_lea.vmem %s4, %s466
      // Predicated region
      $region37: #{tpu_custom_call.1} parent=31 // pred_check
        %p468 = pneg %p116
      $region38: #{tpu_custom_call.1} parent=31 // pred_check_branch
        %470 = sbr.rel (%p468) target = $region40
      $region39: #{tpu_custom_call.1} parent=31 // pred_region
        _
      $region40: #{tpu_custom_call.1} parent=31 // pred_fallthru
        _
      // Predicated region
      $region41: #{tpu_custom_call.1} parent=31 // pred_check
        %p471 = pneg %p142
      $region42: #{tpu_custom_call.1} parent=31 // pred_check_branch
        %473 = sbr.rel (%p471) target = $region44
      $region43: #{tpu_custom_call.1} parent=31 // pred_region
        _
      $region44: #{tpu_custom_call.1} parent=31 // pred_fallthru
        _
    $region32: #{tpu_custom_call.1} parent=5 // pred_fallthru
      _
    %p474 = scmp.le.s32.totalorder 2, %s11
    // Predicated region
    $region45: #{tpu_custom_call.1} parent=5 // pred_check
      %p475 = pneg %p474
    $region46: #{tpu_custom_call.1} parent=5 // pred_check_branch
      %477 = sbr.rel (%p475) target = $region48
    $region47: #{tpu_custom_call.1} parent=5 // pred_region
      %s478 = ssub.s32 %s11, 2
      // Predicated region
      $region49: #{tpu_custom_call.1} parent=47 // pred_check
        %p479 = pneg %p122
      $region50: #{tpu_custom_call.1} parent=47 // pred_check_branch
        %481 = sbr.rel (%p479) target = $region52
      $region51: #{tpu_custom_call.1} parent=47 // pred_region
        %p482 = scmp.lt.s32.totalorder %s22, 1
        %s483 = scalar_select %p482, %s22, 1
        %s484 = smul.addr %s483, 4
        %s485 = smul.addr %s484, 8
        %s486 = scalar_lea.vmem %s3, %s485
      $region52: #{tpu_custom_call.1} parent=47 // pred_fallthru
        _
      // Predicated region
      $region53: #{tpu_custom_call.1} parent=47 // pred_check
        %p487 = pneg %p148
      $region54: #{tpu_custom_call.1} parent=47 // pred_check_branch
        %489 = sbr.rel (%p487) target = $region56
      $region55: #{tpu_custom_call.1} parent=47 // pred_region
        %p490 = scmp.lt.s32.totalorder %s22, 1
        %s491 = scalar_select %p490, %s22, 1
        %s492 = smul.addr %s491, 4
        %s493 = smul.addr %s492, 8
        %s494 = scalar_lea.vmem %s4, %s493
      $region56: #{tpu_custom_call.1} parent=47 // pred_fallthru
        _
    $region48: #{tpu_custom_call.1} parent=5 // pred_fallthru
      _
  $region6: #{tpu_custom_call.1} parent=0 // loop_footer
    %s15 = sadd.s32 1, %s11
  $region7: #{tpu_custom_call.1} parent=0 // loop_footer_branch
    %10 = sbr.rel target = $region3
  $region8: #{tpu_custom_call.1} parent=0 // loop_exit
    _

</llo_original>
